<compile_context>
chip_gen: v5e
topology: v5e:2x2
jax: 0.10.0
libtpu: 0.0.40
codegen_flags: <defaults>
</compile_context>

<pallas_src>
import functools

import jax
import jax.numpy as jnp
from jax.experimental import pallas as pl
from jax.experimental.pallas import tpu as pltpu


_SUBLANE_PACK = 16  # bf16 packs 16 sublanes per native (16, 128) tile


def _round_up(x, m):
    return ((x + m - 1) // m) * m


# ---------------------------------------------------------------------------
# pltpu.roll sign-convention probe (one tiny 8x128 kernel, cached)
# ---------------------------------------------------------------------------
def _probe_roll_kernel(x_ref, o_ref):
    o_ref[...] = pltpu.roll(x_ref[...], shift=1, axis=1)


@functools.lru_cache(maxsize=None)
def _roll_matches_jnp():
    """True iff pltpu.roll(x, s)[..., i] == x[..., (i - s) % n] (jnp.roll)."""
    x = jnp.arange(8 * 128, dtype=jnp.float32).reshape(8, 128)
    y = pl.pallas_call(
        _probe_roll_kernel,
        out_shape=jax.ShapeDtypeStruct((8, 128), jnp.float32),
    )(x)
    v = float(jax.device_get(y[0, 0]))
    if v == 127.0:
        return True
    if v == 1.0:
        return False
    raise RuntimeError(f"unexpected pltpu.roll probe value: {v}")


# ---------------------------------------------------------------------------
# Static helpers (all run in the wrapper, outside the kernel)
# ---------------------------------------------------------------------------
def _tap_shifts(h, w, lanes, roll_is_jnp_like):
    """Lane-roll amount per 3x3 tap realizing y[i] = x[i + dh*W + dw]."""
    taps = []
    for kh in range(3):
        for kw in range(3):
            dh, dw = kh - 1, kw - 1
            d = dh * w + dw
            shift = ((-d) % lanes) if roll_is_jnp_like else (d % lanes)
            taps.append((dh, dw, shift))
    return tuple(taps)


def _make_tap_masks(h, w, taps):
    """(9, H*W) f32 border-validity masks (zero the roll wraparound)."""
    hw = h * w
    pos = jnp.arange(hw, dtype=jnp.int32)
    hh, ww = pos // w, pos % w
    rows = [(((hh + dh) >= 0) & ((hh + dh) < h) &
             ((ww + dw) >= 0) & ((ww + dw) < w)).astype(jnp.float32)
            for (dh, dw, _) in taps]
    return jnp.stack(rows, axis=0)


def _pick_batch_fold(n, hw, max_lanes=4096):
    """How many images to fold into the lane axis per grid step.

    Prefers the largest fold that still leaves >= 2 grid steps (so the v7x
    megacore can split the batch axis) and keeps the lane extent bounded.
    """
    cands = [nb for nb in range(1, n + 1) if n % nb == 0 and nb * hw <= max_lanes]
    if not cands:
        return 1
    multi = [nb for nb in cands if n // nb >= 2]
    return max(multi) if multi else max(cands)


# ---------------------------------------------------------------------------
# Fused kernel: whole conv stack for one grid step, activations VMEM-resident
# ---------------------------------------------------------------------------
def _srmd_stack_kernel(x_ref, mask_ref, *refs, taps, layer_dims):
    """refs = (w_0, b_0, ..., w_{L-1}, b_{L-1}, o_ref, patches_ref).

    x_ref      : (1, cin_pad_0, lanes) f32   channel-padded input images
    mask_ref   : (9, lanes) f32              precomputed border masks
    w_l        : (cout_l, 9*cin_pad_l) bf16  im2col-packed weights (tap-major)
    b_l        : (cout_l, 1) f32             bias
    o_ref      : (1, cout_last, lanes) f32
    patches_ref: (9*max(cin_pad), lanes) bf16   streaming im2col scratch
    """
    num_layers = len(layer_dims)
    o_ref = refs[2 * num_layers]
    patches_ref = refs[2 * num_layers + 1]

    x = x_ref[0].astype(jnp.float32)                       # (cin_pad_0, lanes)
    for layer, (cin_pad, _cout) in enumerate(layer_dims):
        w_ref = refs[2 * layer]
        b_ref = refs[2 * layer + 1]

        # Zero-pad activation channels if this layer expects more (static;
        # never triggered for the default nf=32 configuration).
        if x.shape[0] < cin_pad:
            x = jnp.concatenate(
                [x, jnp.zeros((cin_pad - x.shape[0], x.shape[1]), jnp.float32)],
                axis=0)

        # Stream the 9 masked, lane-rotated taps into the bf16 patches scratch
        # (one tap at a time: bounded vreg liveness, single store pass).
        for t, (dh, dw, shift) in enumerate(taps):
            if dh == 0 and dw == 0:
                tap = x                                     # centre tap: mask == 1
            else:
                tap = pltpu.roll(x, shift=shift, axis=1) * mask_ref[t:t + 1, :]
            patches_ref[t * cin_pad:(t + 1) * cin_pad, :] = tap.astype(jnp.bfloat16)

        # One im2col matmul on the MXU (bf16 x bf16 -> f32 accumulate).
        k = 9 * cin_pad
        y = jnp.dot(w_ref[...], patches_ref[:k, :],
                    preferred_element_type=jnp.float32)     # (cout, lanes) f32
        y = y + b_ref[...]                                   # (cout, 1) broadcast
        if layer < num_layers - 1:                           # ReLU on all but last
            y = jnp.maximum(y, 0.0)
        x = y

    o_ref[0] = x.astype(o_ref.dtype)


# ---------------------------------------------------------------------------
# Parameter packing (done once, hoisted out of the forward)
# ---------------------------------------------------------------------------
def pack_srmd_params(params):
    """PyTorch conv params -> kernel layout.

    weight (Cout, Cin, 3, 3) -> bf16 (Cout, 9*Cin_pad), tap-major columns,
                                Cin zero-padded to a multiple of 16;
    bias   (Cout,)           -> f32 (Cout, 1).
    Returns list of (w_packed, b_packed, cin, cin_pad, cout).
    """
    packed = []
    for w, b in params:
        cout, cin, kh, kw = w.shape
        cin_pad = _round_up(cin, _SUBLANE_PACK)
        w_pad = jnp.pad(jnp.asarray(w, jnp.float32),
                        ((0, 0), (0, cin_pad - cin), (0, 0), (0, 0)))
        w_p = jnp.transpose(w_pad, (0, 2, 3, 1)).reshape(cout, kh * kw * cin_pad)
        packed.append((w_p.astype(jnp.bfloat16),
                       jnp.asarray(b, jnp.float32).reshape(cout, 1),
                       cin, cin_pad, cout))
    return packed


# ---------------------------------------------------------------------------
# Forward wrapper
# ---------------------------------------------------------------------------
def fallback_srmd_forward(x_nchw, packed_params, max_lanes=4096):
    """Forward pass matching _FallbackSRMD.forward. Input/output are NCHW f32."""
    n, c_in, h, w = x_nchw.shape
    hw = h * w
    first_cin, first_cin_pad = packed_params[0][2], packed_params[0][3]
    assert c_in == first_cin, (c_in, first_cin)
    cout_last = packed_params[-1][4]

    nb = _pick_batch_fold(n, hw, max_lanes)     # images folded into lanes / step
    steps = n // nb
    lanes = nb * hw

    taps = _tap_shifts(h, w, lanes, _roll_matches_jnp())
    masks = jnp.tile(_make_tap_masks(h, w, taps), (1, nb))      # (9, lanes)

    # Channel-pad the input once; fold NB images into the lane axis:
    # lane index = b*hw + pixel, matching the tiled masks / roll shifts.
    x = jnp.asarray(x_nchw, jnp.float32).reshape(n, c_in, hw)
    if first_cin_pad > c_in:
        x = jnp.pad(x, ((0, 0), (0, first_cin_pad - c_in), (0, 0)))
    x = (x.reshape(steps, nb, first_cin_pad, hw)
          .transpose(0, 2, 1, 3)
          .reshape(steps, first_cin_pad, lanes))

    layer_dims = tuple((cp, co) for (_, _, _, cp, co) in packed_params)
    k_max = 9 * max(cp for cp, _ in layer_dims)

    in_specs = [pl.BlockSpec((1, first_cin_pad, lanes), lambda g: (g, 0, 0)),
                pl.BlockSpec((9, lanes), lambda g: (0, 0))]
    args = [x, masks]
    for (w_p, b_p, _, _, _) in packed_params:
        in_specs.append(pl.BlockSpec(w_p.shape, lambda g: (0, 0)))
        in_specs.append(pl.BlockSpec(b_p.shape, lambda g: (0, 0)))
        args.extend([w_p, b_p])

    kernel = functools.partial(_srmd_stack_kernel, taps=taps, layer_dims=layer_dims)

    out = pl.pallas_call(
        kernel,
        out_shape=jax.ShapeDtypeStruct((steps, cout_last, lanes), jnp.float32),
        grid_spec=pltpu.PrefetchScalarGridSpec(
            num_scalar_prefetch=0,
            grid=(steps,),
            in_specs=in_specs,
            out_specs=pl.BlockSpec((1, cout_last, lanes), lambda g: (g, 0, 0)),
            scratch_shapes=[pltpu.VMEM((k_max, lanes), jnp.bfloat16)],
        ),
        compiler_params=pltpu.CompilerParams(
            dimension_semantics=("parallel",)),
    )(*args)

    out = (out.reshape(steps, cout_last, nb, hw)
              .transpose(0, 2, 1, 3)
              .reshape(n, cout_last, h, w))
    return out


# ---------------------------------------------------------------------------
# Params / references / test
# ---------------------------------------------------------------------------
def init_srmd_params(key, num_in_ch=1, num_out_ch=1, nf=32, num_blocks=4):
    """Deterministic synthetic params, PyTorch conv layout (Cout,Cin,kh,kw)."""
    specs = [(nf, num_in_ch)] + [(nf, nf)] * num_blocks + [(num_out_ch, nf)]
    params = []
    for (cout, cin) in specs:
        key, kw_, kb_ = jax.random.split(key, 3)
        fan_in = cin * 9
        bound = 1.0 / jnp.sqrt(fan_in)
        w = jax.random.uniform(kw_, (cout, cin, 3, 3), jnp.float32,
                               minval=-bound, maxval=bound)
        b = jax.random.uniform(kb_, (cout,), jnp.float32,
                               minval=-bound, maxval=bound)
        params.append((w, b))
    return params


def srmd_reference(x_nchw, params):
    """Pure-f32 reference (PyTorch Conv2d semantics)."""
    y = jnp.asarray(x_nchw, jnp.float32)
    n_layers = len(params)
    for i, (w, b) in enumerate(params):
        y = jax.lax.conv_general_dilated(
            y, w, (1, 1), ((1, 1), (1, 1)),
            dimension_numbers=("NCHW", "OIHW", "NCHW"),
            precision=jax.lax.Precision.HIGHEST)
        y = y + b[None, :, None, None]
        if i < n_layers - 1:
            y = jnp.maximum(y, 0.0)
    return y


def srmd_reference_bf16ops(x_nchw, params):
    """Reference matching the kernel's numerics: bf16 operands, f32 accumulate."""
    y = jnp.asarray(x_nchw, jnp.float32)
    n_layers = len(params)
    for i, (w, b) in enumerate(params):
        y_q = y.astype(jnp.bfloat16).astype(jnp.float32)
        w_q = w.astype(jnp.bfloat16).astype(jnp.float32)
        y = jax.lax.conv_general_dilated(
            y_q, w_q, (1, 1), ((1, 1), (1, 1)),
            dimension_numbers=("NCHW", "OIHW", "NCHW"),
            precision=jax.lax.Precision.HIGHEST)
        y = y + b[None, :, None, None]
        if i < n_layers - 1:
            y = jnp.maximum(y, 0.0)
    return y


if __name__ == "__main__":
    key = jax.random.PRNGKey(0)
    k_in, k_par = jax.random.split(key)

    # Module defaults: num_in_ch=1, num_out_ch=1, nf=32, num_blocks=4.
    N, C_IN, H, W = 2, 1, 16, 16
    x = jax.random.normal(k_in, (N, C_IN, H, W), jnp.float32)

    params = init_srmd_params(k_par, num_in_ch=C_IN, num_out_ch=1,
                              nf=32, num_blocks=4)
    packed = pack_srmd_params(params)

    out = jax.block_until_ready(fallback_srmd_forward(x, packed))
    assert out.shape == (N, 1, H, W), out.shape

    # Tight check against a reference with identical numerics (bf16 operands,
    # f32 accumulation), loose check against the pure-f32 reference.
    ref_bf16 = srmd_reference_bf16ops(x, params)
    ref_f32 = srmd_reference(x, params)
    err_bf16 = float(jnp.max(jnp.abs(out - ref_bf16)))
    err_f32 = float(jnp.max(jnp.abs(out - ref_f32)))
    assert err_bf16 < 1e-2, f"max abs error vs bf16-operand reference: {err_bf16}"
    assert err_f32 < 5e-2, f"max abs error vs f32 reference: {err_f32}"

    print("KERNEL_OK")
</pallas_src>

<mosaic_0001>
module attributes {stable_mosaic.version = 11 : i64} {
  func.func @_probe_roll_kernel(%arg0: memref<8x128xf32, #tpu.memory_space<vmem>>, %arg1: memref<8x128xf32, #tpu.memory_space<vmem>>) attributes {dimension_semantics = [], scalar_prefetch = 0 : i64, scratch_operands = 0 : i64, tpu.core_type = #tpu.core_type<tc>} {
    %c0 = arith.constant 0 : index
    %c0_0 = arith.constant 0 : index
    %0 = vector.load %arg0[%c0, %c0_0] : memref<8x128xf32, #tpu.memory_space<vmem>>, vector<8x128xf32>
    %c1_i32 = arith.constant 1 : i32
    %1 = tpu.dynamic_rotate %0 by %c1_i32 dim 1 : vector<8x128xf32>, i32 -> vector<8x128xf32>
    %c0_1 = arith.constant 0 : index
    %c0_2 = arith.constant 0 : index
    %2 = vector.load %arg1[%c0_1, %c0_2] : memref<8x128xf32, #tpu.memory_space<vmem>>, vector<8x128xf32>
    tpu.vector_store %arg1[%c0_1, %c0_2], %1 {strides = array<i32>} : memref<8x128xf32, #tpu.memory_space<vmem>>, vector<8x128xf32>,
    return
  }
}

</mosaic_0001>

<llo_original>
// kernel: tpu_custom_call.1
$region0: #{tpu_custom_call.1}
  #allocation0 [shape = 'u32[]', space=smem, size = 0x4, offset = 0x4, fixed_abs, tag = 'smem constant byte address 0x4 - core index']
  #allocation1 [shape = 'u32[72,128]{1,0:T(1,128)}', space=vmem, size = 0x9000, scoped, tag = 'internal scratch']
  %s0 = inlined_call_operand.hbm [shape: f32[8,128], index: 0, kind: input, shape index: {}]
  %s1 = inlined_call_operand.hbm [shape: f32[8,128], index: 1, kind: output, shape index: {}]
  %s2 = sld [smem:[#allocation0]]
  $region18: #{tpu_custom_call.1} parent=0
    _
  %s4 = ssub.s32 1, %s2
  %s5 = scalar_select 0, %s4, %s2
  $region1: #{tpu_custom_call.1} parent=0
    #allocation2 [shape = 'u8[4096]{0}', space=vmem, size = 0x1000, scoped, tag = 'input window, operand 0, single buffered']
    #allocation3 [shape = 's32[1]{0}', space=sflag, size = 0x4, scoped, tag = 'scoped memory for tpu_custom_call.1']
    #allocation4 [shape = 's32[1]{0}', space=sflag, size = 0x4, scoped, tag = 'scoped memory for tpu_custom_call.1']
    #allocation5 [shape = 'u8[4096]{0}', space=vmem, size = 0x1000, scoped, tag = 'output window, operand 0, single buffered']
    %6 = vsyncpa [#allocation3], 0
    %7 = vsyncpa [#allocation4], 0
    // Predicated region
    $region2: #{tpu_custom_call.1} parent=1 // pred_check
      _
    $region3: #{tpu_custom_call.1} parent=1 // pred_check_branch
      %9 = sbr.rel (0) target = $region5
    $region4: #{tpu_custom_call.1} parent=1 // pred_region
      %11 = vsyncadd [#allocation3], 0
      %s13 = sshll.u32 %s0, 4
      %s14 = int_to_ptr.hbm [resolvable:$true] %s13
      %s15 = sshll.u32 [#allocation2], 4
      %s16 = int_to_ptr.vmem [resolvable:$true] %s15
      %18 = dma.hbm_to_vmem [thread:$0]  %s14, 128, %s16, [#allocation3]
    $region5: #{tpu_custom_call.1} parent=1 // pred_fallthru
      _
    // Predicated region
    $region6: #{tpu_custom_call.1} parent=1 // pred_check
      _
    $region7: #{tpu_custom_call.1} parent=1 // pred_check_branch
      %20 = sbr.rel (0) target = $region9
    $region8: #{tpu_custom_call.1} parent=1 // pred_region
      %22 = dma.done [#allocation3], 128
    $region9: #{tpu_custom_call.1} parent=1 // pred_fallthru
      _
    %v23 = vld [vmem:[#allocation2] sm:$0xff]
    %24 = vrot.lane.b32.xlu0 %v23, 1
    %v25 = vpop.permute.xlu0 %24
    %26 = vst [vmem:[#allocation5] sm:$0xff] %v25
    // Predicated region
    $region10: #{tpu_custom_call.1} parent=1 // pred_check
      _
    $region11: #{tpu_custom_call.1} parent=1 // pred_check_branch
      %28 = sbr.rel (0) target = $region13
    $region12: #{tpu_custom_call.1} parent=1 // pred_region
      %30 = vsyncadd [#allocation4], 0
      %s32 = sshll.u32 [#allocation5], 4
      %s33 = int_to_ptr.vmem [resolvable:$true] %s32
      %s34 = sshll.u32 %s1, 4
      %s35 = int_to_ptr.hbm [resolvable:$true] %s34
      %37 = dma.vmem_to_hbm [thread:$0]  %s33, 128, %s35, [#allocation4]
    $region13: #{tpu_custom_call.1} parent=1 // pred_fallthru
      _
    // Predicated region
    $region14: #{tpu_custom_call.1} parent=1 // pred_check
      _
    $region15: #{tpu_custom_call.1} parent=1 // pred_check_branch
      %39 = sbr.rel (0) target = $region17
    $region16: #{tpu_custom_call.1} parent=1 // pred_region
      %41 = dma.done [#allocation4], 128
    $region17: #{tpu_custom_call.1} parent=1 // pred_fallthru
      _
    %42 = vsyncpa [#allocation3], 1
    %43 = vsyncpa [#allocation4], 1

</llo_original>
